<compile_context>
chip_gen: v5e
topology: v5e:2x2
jax: 0.10.0
libtpu: 0.0.40
codegen_flags: <defaults>
</compile_context>

<pallas_src>
import math

import jax
import jax.numpy as jnp
from jax.experimental import pallas as pl
from jax.experimental.pallas import tpu as pltpu

LANES = 128
SUBLANES = 8
# ~2 MiB per operand block: 3 operands x 2 pipeline buffers ~= 12 MiB of VMEM.
TARGET_BLOCK_BYTES = 2 << 20
# Explicit scoped-VMEM budget (<= physical VMEM on v5e/v6e/v7x); documents the
# headroom and keeps the 2 MiB blocks safe on v5e's 16 MiB scoped default.
VMEM_LIMIT_BYTES = 32 << 20
# Below this flat element count an unaligned tensor is run as one (1, n) block.
_FLAT_SINGLE_BLOCK_MAX = 65536

_SMEM_SPEC = pl.BlockSpec(memory_space=pltpu.MemorySpace.SMEM)
_VMEM_SPEC = pl.BlockSpec(memory_space=pltpu.MemorySpace.VMEM)


# --------------------------------------------------------------------------- #
# In-kernel compute
# --------------------------------------------------------------------------- #
def _floordiv_values(a, b, out_dtype):
    """floor(a / b) with torch.floor_divide semantics; a, b broadcast."""
    if jnp.issubdtype(jnp.dtype(out_dtype), jnp.integer):
        ai = a.astype(jnp.int32)
        bi = b.astype(jnp.int32)
        q = jnp.floor(ai.astype(jnp.float32) / bi.astype(jnp.float32)).astype(jnp.int32)
        # Exact int32 remainder of the f32 estimate; fix q so the floor-division
        # invariant (r has the sign of b and |r| < |b|) holds.  Exact whenever
        # the f32 quotient is within +-1 of the true quotient.
        r = ai - q * bi
        b_neg = bi < 0
        too_high = (r != 0) & ((r < 0) != b_neg)        # q is one too large
        too_low = jnp.where(b_neg, r <= bi, r >= bi)    # q is one too small
        q = q - too_high.astype(jnp.int32) + too_low.astype(jnp.int32)
        # TODO(synk): torch.floor_divide raises on integer division by zero;
        # TPU has no traps, so b == 0 silently yields an unspecified value.
        return q.astype(out_dtype)
    # TODO(synk): torch computes bf16/f16 division in the input dtype; we use
    # f32 (never less accurate, but not always bit-identical near integers).
    return jnp.floor(a.astype(jnp.float32) / b.astype(jnp.float32)).astype(out_dtype)


def _floordiv_kernel(a_ref, b_ref, o_ref):
    # b_ref (or a_ref) may be (tr, 1) / (1, tc) and is broadcast in-kernel.
    o_ref[...] = _floordiv_values(a_ref[...], b_ref[...], o_ref.dtype)


def _make_scalar_kernel(scalar_is_right):
    def kernel(s_ref, x_ref, o_ref):   # s_ref: (1, 1) in SMEM
        s = s_ref[0, 0]
        x = x_ref[...]
        a, b = (x, s) if scalar_is_right else (s, x)
        o_ref[...] = _floordiv_values(a, b, o_ref.dtype)
    return kernel


# --------------------------------------------------------------------------- #
# Tiling helpers
# --------------------------------------------------------------------------- #
def _round_down(x, m):
    return (x // m) * m


def _pick_cols(n):
    """Widest lane-dense (multiple of 128) column count that divides n."""
    for cols in (8192, 4096, 2048, 1024, 512, 256, 128):
        if n % cols == 0:
            return cols
    return None


def _tile_rows(rows, tile_cols, itemsize):
    """Rows per block: multiple of 8 (or all rows), ~TARGET_BLOCK_BYTES/operand.
    No artificial grid carve-up: biggest block that fits the budget wins."""
    if rows <= SUBLANES:
        return rows
    bytes_per_row = max(1, tile_cols * itemsize)
    tr = _round_down(max(TARGET_BLOCK_BYTES // bytes_per_row, SUBLANES), SUBLANES)
    return min(max(SUBLANES, tr), _round_down(rows, SUBLANES))


def _flat_block_elems(itemsize):
    quantum = SUBLANES * LANES
    return max(quantum, _round_down(TARGET_BLOCK_BYTES // itemsize, quantum))


def _compiler_params(n_grid_dims):
    kwargs = dict(vmem_limit_bytes=VMEM_LIMIT_BYTES)
    if n_grid_dims:
        # Pure elementwise: every grid axis is independent; let the runtime
        # shard across TensorCores on multi-TC chips if it helps.
        kwargs["dimension_semantics"] = ("parallel",) * n_grid_dims
    return pltpu.CompilerParams(**kwargs)


def _launch_2d(kernel, inputs, in_specs, out_rows, out_cols,
               tile_rows, tile_cols, out_dtype):
    grid = (pl.cdiv(out_rows, tile_rows), pl.cdiv(out_cols, tile_cols))
    return pl.pallas_call(
        kernel,
        out_shape=jax.ShapeDtypeStruct((out_rows, out_cols), out_dtype),
        grid_spec=pltpu.PrefetchScalarGridSpec(
            num_scalar_prefetch=0,
            grid=grid,
            in_specs=in_specs,
            out_specs=pl.BlockSpec((tile_rows, tile_cols), lambda i, j: (i, j)),
        ),
        compiler_params=_compiler_params(len(grid)),
    )(*inputs)


def _unaligned_launch(kernel, smem_scalar, big_arrays, n, out_dtype, itemsize):
    """Elementwise launch over flat, non-128-aligned data (no pad / slice)."""
    if n <= _FLAT_SINGLE_BLOCK_MAX:
        # Single whole-array block, presented as (1, n) so the block equals the
        # full array dims (always a legal TPU block shape).
        args, specs = [], []
        if smem_scalar is not None:
            args.append(smem_scalar)
            specs.append(_SMEM_SPEC)
        for arr in big_arrays:
            args.append(arr.reshape(1, n))
            specs.append(_VMEM_SPEC)
        out = pl.pallas_call(
            kernel,
            out_shape=jax.ShapeDtypeStruct((1, n), out_dtype),
            in_specs=specs,
            out_specs=_VMEM_SPEC,
            compiler_params=_compiler_params(0),
        )(*args)
        return out.reshape(-1)

    # Large unaligned tensor: stream 1-D blocks; the partial tail block is
    # handled by Pallas' boundary masking inside the kernel.
    blk = min(_flat_block_elems(itemsize), _round_down(n, SUBLANES * LANES))
    grid = (pl.cdiv(n, blk),)
    args, specs = [], []
    if smem_scalar is not None:
        args.append(smem_scalar)
        specs.append(_SMEM_SPEC)
    for arr in big_arrays:
        args.append(arr.reshape(-1))
        specs.append(pl.BlockSpec((blk,), lambda i: (i,)))
    out = pl.pallas_call(
        kernel,
        out_shape=jax.ShapeDtypeStruct((n,), out_dtype),
        grid_spec=pltpu.PrefetchScalarGridSpec(
            num_scalar_prefetch=0,
            grid=grid,
            in_specs=specs,
            out_specs=pl.BlockSpec((blk,), lambda i: (i,)),
        ),
        compiler_params=_compiler_params(1),
    )(*args)
    return out


# --------------------------------------------------------------------------- #
# Shape-specific drivers
# --------------------------------------------------------------------------- #
def _floordiv_same_shape(a, b, out_shape, out_dtype):
    """a.shape == b.shape == out_shape; no broadcasting left to do."""
    n = math.prod(out_shape)
    itemsize = max(jnp.dtype(a.dtype).itemsize, jnp.dtype(b.dtype).itemsize,
                   jnp.dtype(out_dtype).itemsize)
    cols = _pick_cols(n)
    if cols is None:
        out = _unaligned_launch(_floordiv_kernel, None, (a, b), n, out_dtype, itemsize)
        return out.reshape(out_shape)
    rows = n // cols
    tr = _tile_rows(rows, cols, itemsize)
    idx = lambda i, j: (i, j)
    out2d = _launch_2d(
        _floordiv_kernel,
        (a.reshape(rows, cols), b.reshape(rows, cols)),
        [pl.BlockSpec((tr, cols), idx), pl.BlockSpec((tr, cols), idx)],
        rows, cols, tr, cols, out_dtype)
    return out2d.reshape(out_shape)


def _floordiv_scalar(big, scalar, scalar_is_right, out_shape, out_dtype):
    """big.shape == out_shape; the other operand is a single scalar (via SMEM)."""
    n = math.prod(out_shape)
    itemsize = max(jnp.dtype(big.dtype).itemsize, jnp.dtype(out_dtype).itemsize)
    integer = jnp.issubdtype(jnp.dtype(out_dtype), jnp.integer)
    s = scalar.reshape(1, 1).astype(jnp.int32 if integer else jnp.float32)
    kernel = _make_scalar_kernel(scalar_is_right)
    cols = _pick_cols(n)
    if cols is None:
        out = _unaligned_launch(kernel, s, (big,), n, out_dtype, itemsize)
        return out.reshape(out_shape)
    rows = n // cols
    tr = _tile_rows(rows, cols, itemsize)
    out2d = _launch_2d(
        kernel, (s, big.reshape(rows, cols)),
        [_SMEM_SPEC, pl.BlockSpec((tr, cols), lambda i, j: (i, j))],
        rows, cols, tr, cols, out_dtype)
    return out2d.reshape(out_shape)


def _aligned_shape(shape, nd):
    return (1,) * (nd - len(shape)) + tuple(shape)


def _floordiv_big_small(big, small, small_is_right, out_shape, out_dtype):
    """big broadcasts trivially to out_shape; small truly broadcasts.
    Returns None when no fast path applies (caller falls back)."""
    nd = len(out_shape)
    itemsize = max(jnp.dtype(big.dtype).itemsize, jnp.dtype(out_dtype).itemsize)

    if small.size == 1:
        return _floordiv_scalar(big, small, small_is_right, out_shape, out_dtype)

    s = _aligned_shape(small.shape, nd)
    nz = [i for i, d in enumerate(s) if d != 1]
    first_nz, last_nz = nz[0], nz[-1]

    # --- Column broadcast: small varies only over leading axes, e.g. [1,C,1,1].
    p = last_nz + 1
    if p < nd:
        R = math.prod(out_shape[:p])
        K = math.prod(out_shape[p:])
        if K % LANES == 0:   # keep output blocks lane-dense (no masked vst)
            small_col = jnp.broadcast_to(small.reshape(s[:p]), out_shape[:p]).reshape(R, 1)
            big2d = big.reshape(R, K)
            tile_cols = min(K, 8192)
            tr = _tile_rows(R, tile_cols, itemsize)
            big_spec = pl.BlockSpec((tr, tile_cols), lambda i, j: (i, j))
            sml_spec = pl.BlockSpec((tr, 1), lambda i, j: (i, 0))
            if small_is_right:
                inputs, specs = (big2d, small_col), [big_spec, sml_spec]
            else:
                inputs, specs = (small_col, big2d), [sml_spec, big_spec]
            out2d = _launch_2d(_floordiv_kernel, inputs, specs,
                               R, K, tr, tile_cols, out_dtype)
            return out2d.reshape(out_shape)

    # --- Row broadcast: small varies only over trailing axes, e.g. [1,1,H,W].
    if s[first_nz:] == tuple(out_shape[first_nz:]):
        R = math.prod(out_shape[:first_nz])
        K = math.prod(out_shape[first_nz:])
        if K % LANES == 0:
            small_row = small.reshape(1, K)
            big2d = big.reshape(R, K)
            tile_cols = min(K, 8192)
            tr = _tile_rows(R, tile_cols, itemsize)
            big_spec = pl.BlockSpec((tr, tile_cols), lambda i, j: (i, j))
            sml_spec = pl.BlockSpec((1, tile_cols), lambda i, j: (0, j))
            if small_is_right:
                inputs, specs = (big2d, small_row), [big_spec, sml_spec]
            else:
                inputs, specs = (small_row, big2d), [sml_spec, big_spec]
            out2d = _launch_2d(_floordiv_kernel, inputs, specs,
                               R, K, tr, tile_cols, out_dtype)
            return out2d.reshape(out_shape)

    return None


# --------------------------------------------------------------------------- #
# Public entry point (QFloorDiv.forward)
# --------------------------------------------------------------------------- #
def qfloordiv(x_left, x_right):
    """Pallas implementation of QFloorDiv.forward: out = x_left // x_right."""
    x_left = jnp.asarray(x_left)
    x_right = jnp.asarray(x_right)
    out_shape = tuple(jnp.broadcast_shapes(x_left.shape, x_right.shape))
    out_dtype = jnp.result_type(x_left, x_right)
    nd = len(out_shape)
    n = math.prod(out_shape)
    if n == 0:
        return jnp.zeros(out_shape, out_dtype)

    if x_left.shape == x_right.shape:
        return _floordiv_same_shape(x_left, x_right, out_shape, out_dtype)

    left_is_big = _aligned_shape(x_left.shape, nd) == out_shape
    right_is_big = _aligned_shape(x_right.shape, nd) == out_shape
    if left_is_big != right_is_big:
        big, small = (x_left, x_right) if left_is_big else (x_right, x_left)
        out = _floordiv_big_small(big, small, small_is_right=left_is_big,
                                  out_shape=out_shape, out_dtype=out_dtype)
        if out is not None:
            return out

    # General fallback (both operands partially broadcast / awkward shapes):
    # materialize the broadcast, then run the same-shape path.
    a = jnp.broadcast_to(x_left, out_shape)
    b = jnp.broadcast_to(x_right, out_shape)
    return _floordiv_same_shape(a, b, out_shape, out_dtype)


if __name__ == "__main__":
    key = jax.random.PRNGKey(0)
    k1, k2, k3, k4, k5, k6, k7, k8 = jax.random.split(key, 8)

    # 1) Same-shape float floor-division (NCHW), lane-aligned element count.
    x_left = jax.random.normal(k1, (2, 4, 16, 16), dtype=jnp.float32) * 4.0
    x_right = jax.random.normal(k2, (2, 4, 16, 16), dtype=jnp.float32) + 2.0
    out = qfloordiv(x_left, x_right)
    jax.block_until_ready(out)
    ref = jnp.floor(x_left / x_right)          # == torch.floor_divide semantics
    assert out.shape == ref.shape and out.dtype == ref.dtype
    assert jnp.allclose(out, ref, rtol=1e-6, atol=1e-6, equal_nan=True)

    # 2) Column broadcast: per-channel divisor [1, C, 1, 1].
    scale = jax.random.uniform(k3, (1, 4, 1, 1), dtype=jnp.float32) + 0.5
    out_b = qfloordiv(x_left, scale)
    jax.block_until_ready(out_b)
    assert jnp.allclose(out_b, jnp.floor(x_left / scale), rtol=1e-6, atol=1e-6)

    # 3) Row broadcast: spatial divisor [1, 1, H, W].
    wmap = jax.random.uniform(k6, (1, 1, 16, 16), dtype=jnp.float32,
                              minval=0.5, maxval=3.0)
    out_r = qfloordiv(x_left, wmap)
    jax.block_until_ready(out_r)
    assert jnp.allclose(out_r, jnp.floor(x_left / wmap), rtol=1e-6, atol=1e-6)

    # 4) Scalar divisor (SMEM path).
    out_s = qfloordiv(x_left, jnp.float32(2.5))
    jax.block_until_ready(out_s)
    assert jnp.allclose(out_s, jnp.floor(x_left / jnp.float32(2.5)),
                        rtol=1e-6, atol=1e-6)

    # 5) Integer floor-division (rounds toward -inf, exact via remainder fix).
    xi = jax.random.randint(k4, (2, 4, 16, 16), -50, 50, dtype=jnp.int32)
    di = jax.random.randint(k5, (2, 4, 16, 16), 1, 7, dtype=jnp.int32)
    di = di * jnp.where((xi % 2) == 0, 1, -1).astype(jnp.int32)
    out_i = qfloordiv(xi, di)
    jax.block_until_ready(out_i)
    ref_i = xi // di
    assert out_i.dtype == ref_i.dtype and jnp.array_equal(out_i, ref_i)

    # 6) Unaligned element count (105 = 3*5*7): in-kernel tail, no pad/slice.
    xu = jax.random.normal(k7, (3, 5, 7), dtype=jnp.float32) * 4.0
    du = jax.random.uniform(k8, (3, 5, 7), dtype=jnp.float32, minval=0.5, maxval=3.0)
    out_u = qfloordiv(xu, du)
    jax.block_until_ready(out_u)
    assert jnp.allclose(out_u, jnp.floor(xu / du), rtol=1e-6, atol=1e-6)

    print("KERNEL_OK")
</pallas_src>

<mosaic_0001>
module attributes {stable_mosaic.version = 11 : i64} {
  func.func @_floordiv_kernel(%arg0: i32, %arg1: i32, %arg2: memref<1x2048xf32, #tpu.memory_space<vmem>>, %arg3: memref<1x2048xf32, #tpu.memory_space<vmem>>, %arg4: memref<1x2048xf32, #tpu.memory_space<vmem>>) attributes {dimension_semantics = [#tpu.dimension_semantics<parallel>, #tpu.dimension_semantics<parallel>], iteration_bounds = array<i64: 1, 1>, scalar_prefetch = 0 : i64, scratch_operands = 0 : i64, tpu.core_type = #tpu.core_type<tc>, window_params = [{transform_indices = @transform_0, window_bounds = array<i64: 1, 2048>}, {transform_indices = @transform_1, window_bounds = array<i64: 1, 2048>}, {transform_indices = @transform_2, window_bounds = array<i64: 1, 2048>}]} {
    %c0 = arith.constant 0 : index
    %c0_0 = arith.constant 0 : index
    %0 = vector.load %arg2[%c0, %c0_0] : memref<1x2048xf32, #tpu.memory_space<vmem>>, vector<1x2048xf32>
    %c0_1 = arith.constant 0 : index
    %c0_2 = arith.constant 0 : index
    %1 = vector.load %arg3[%c0_1, %c0_2] : memref<1x2048xf32, #tpu.memory_space<vmem>>, vector<1x2048xf32>
    %2 = arith.divf %0, %1 : vector<1x2048xf32>
    %3 = math.floor %2 : vector<1x2048xf32>
    %c0_3 = arith.constant 0 : index
    %c0_4 = arith.constant 0 : index
    %4 = vector.load %arg4[%c0_3, %c0_4] : memref<1x2048xf32, #tpu.memory_space<vmem>>, vector<1x2048xf32>
    tpu.vector_store %arg4[%c0_3, %c0_4], %3 {strides = array<i32>} : memref<1x2048xf32, #tpu.memory_space<vmem>>, vector<1x2048xf32>,
    return
  }
  func.func @transform_0(%arg0: i32, %arg1: i32) -> (i32, i32) {
    %c0_i32 = arith.constant 0 : i32
    return %arg0, %arg1 : i32, i32
  }
  func.func @transform_1(%arg0: i32, %arg1: i32) -> (i32, i32) {
    %c0_i32 = arith.constant 0 : i32
    return %arg0, %arg1 : i32, i32
  }
  func.func @transform_2(%arg0: i32, %arg1: i32) -> (i32, i32) {
    %c0_i32 = arith.constant 0 : i32
    return %arg0, %arg1 : i32, i32
  }
}

</mosaic_0001>

<llo_original>
// kernel: tpu_custom_call.1
$region0: #{tpu_custom_call.1}
  #allocation0 [shape = 'u32[]', space=smem, size = 0x4, offset = 0x4, fixed_abs, tag = 'smem constant byte address 0x4 - core index']
  #allocation1 [shape = 'u32[72,128]{1,0:T(1,128)}', space=vmem, size = 0x9000, scoped, tag = 'internal scratch']
  %s0 = inlined_call_operand.hbm [shape: f32[1,2048], index: 0, kind: input, shape index: {}]
  %s1 = inlined_call_operand.hbm [shape: f32[1,2048], index: 1, kind: input, shape index: {}]
  %s2 = inlined_call_operand.hbm [shape: f32[1,2048], index: 2, kind: output, shape index: {}]
  %s3 = sld [smem:[#allocation0]]
  $region26: #{tpu_custom_call.1} parent=0
    _
  %s5 = ssub.s32 1, %s3
  %s6 = scalar_select 0, %s5, %s3
  $region1: #{tpu_custom_call.1} parent=0
    #allocation2 [shape = 'u8[8192]{0}', space=vmem, size = 0x2000, scoped, tag = 'input window, operand 0, single buffered']
    #allocation3 [shape = 's32[1]{0}', space=sflag, size = 0x4, scoped, tag = 'scoped memory for tpu_custom_call.1']
    #allocation4 [shape = 's32[1]{0}', space=sflag, size = 0x4, scoped, tag = 'scoped memory for tpu_custom_call.1']
    #allocation5 [shape = 'u8[8192]{0}', space=vmem, size = 0x2000, scoped, tag = 'input window, operand 1, single buffered']
    #allocation6 [shape = 's32[1]{0}', space=sflag, size = 0x4, scoped, tag = 'scoped memory for tpu_custom_call.1']
    #allocation7 [shape = 'u8[8192]{0}', space=vmem, size = 0x2000, scoped, tag = 'output window, operand 0, single buffered']
    %7 = vsyncpa [#allocation3], 0
    %8 = vsyncpa [#allocation6], 0
    %9 = vsyncpa [#allocation4], 0
    // Predicated region
    $region2: #{tpu_custom_call.1} parent=1 // pred_check
      _
    $region3: #{tpu_custom_call.1} parent=1 // pred_check_branch
      %11 = sbr.rel (0) target = $region5
    $region4: #{tpu_custom_call.1} parent=1 // pred_region
      %13 = vsyncadd [#allocation3], 0
      %s15 = sshll.u32 %s0, 4
      %s16 = int_to_ptr.hbm [resolvable:$true] %s15
      %s17 = sshll.u32 [#allocation2], 4
      %s18 = int_to_ptr.vmem [resolvable:$true] %s17
      %20 = dma.hbm_to_vmem [thread:$0]  %s16, 256, %s18, [#allocation3]
    $region5: #{tpu_custom_call.1} parent=1 // pred_fallthru
      _
    // Predicated region
    $region6: #{tpu_custom_call.1} parent=1 // pred_check
      _
    $region7: #{tpu_custom_call.1} parent=1 // pred_check_branch
      %22 = sbr.rel (0) target = $region9
    $region8: #{tpu_custom_call.1} parent=1 // pred_region
      %24 = vsyncadd [#allocation6], 0
      %s26 = sshll.u32 %s1, 4
      %s27 = int_to_ptr.hbm [resolvable:$true] %s26
      %s28 = sshll.u32 [#allocation5], 4
      %s29 = int_to_ptr.vmem [resolvable:$true] %s28
      %31 = dma.hbm_to_vmem [thread:$0]  %s27, 256, %s29, [#allocation6]
    $region9: #{tpu_custom_call.1} parent=1 // pred_fallthru
      _
    // Predicated region
    $region10: #{tpu_custom_call.1} parent=1 // pred_check
      _
    $region11: #{tpu_custom_call.1} parent=1 // pred_check_branch
      %33 = sbr.rel (0) target = $region13
    $region12: #{tpu_custom_call.1} parent=1 // pred_region
      %35 = dma.done [#allocation3], 256
    $region13: #{tpu_custom_call.1} parent=1 // pred_fallthru
      _
    // Predicated region
    $region14: #{tpu_custom_call.1} parent=1 // pred_check
      _
    $region15: #{tpu_custom_call.1} parent=1 // pred_check_branch
      %37 = sbr.rel (0) target = $region17
    $region16: #{tpu_custom_call.1} parent=1 // pred_region
      %39 = dma.done [#allocation6], 256
    $region17: #{tpu_custom_call.1} parent=1 // pred_fallthru
      _
    %v40 = vld [vmem:[#allocation2] sm:$0xff]
    %v41 = vld [vmem:[#allocation2 + $0x8] sm:$0xff]
    %v42 = vld [vmem:[#allocation5] sm:$0xff]
    %v43 = vld [vmem:[#allocation5 + $0x8] sm:$0xff]
    %v44 = vrcp.pop %v42
    %v45 = vmul.f32 %v42, %v44
    %v46 = vsub.f32 1.0, %v45
    %v47 = vmul.f32 %v44, %v46
    %v48 = vadd.f32 %v44, %v47
    %vm49 = vweird.f32 %v42
    %vm50 = vweird.f32 %v44
    %vm51 = vmor %vm49, %vm50
    %v52 = vsel %vm51, %v44, %v48
    %v53 = vand.u32 2147483647, %v42
    %vm54 = vcmp.eq.f32.partialorder %v53, 8.507059e+37
    %v55 = vand.u32 %v42, 2147483648
    %v56 = vor.u32 1.1754944e-38, %v55
    %v57 = vsel %vm54, %v56, %v52
    %v58 = vmul.f32 %v40, %v57
    %v59 = vrcp.pop %v43
    %v60 = vmul.f32 %v43, %v59
    %v61 = vsub.f32 1.0, %v60
    %v62 = vmul.f32 %v59, %v61
    %v63 = vadd.f32 %v59, %v62
    %vm64 = vweird.f32 %v43
    %vm65 = vweird.f32 %v59
    %vm66 = vmor %vm64, %vm65
    %v67 = vsel %vm66, %v59, %v63
    %v68 = vand.u32 2147483647, %v43
    %vm69 = vcmp.eq.f32.partialorder %v68, 8.507059e+37
    %v70 = vand.u32 %v43, 2147483648
    %v71 = vor.u32 1.1754944e-38, %v70
    %v72 = vsel %vm69, %v71, %v67
    %v73 = vmul.f32 %v41, %v72
    %v74 = vfloor.f32 %v58
    %v75 = vfloor.f32 %v73
    %76 = vst [vmem:[#allocation7] sm:$0xff] %v74
    %77 = vst [vmem:[#allocation7 + $0x8] sm:$0xff] %v75
    // Predicated region
    $region18: #{tpu_custom_call.1} parent=1 // pred_check
      _
    $region19: #{tpu_custom_call.1} parent=1 // pred_check_branch
      %79 = sbr.rel (0) target = $region21
    $region20: #{tpu_custom_call.1} parent=1 // pred_region
      %81 = vsyncadd [#allocation4], 0
      %s83 = sshll.u32 [#allocation7], 4
      %s84 = int_to_ptr.vmem [resolvable:$true] %s83
      %s85 = sshll.u32 %s2, 4
      %s86 = int_to_ptr.hbm [resolvable:$true] %s85
      %88 = dma.vmem_to_hbm [thread:$0]  %s84, 256, %s86, [#allocation4]
    $region21: #{tpu_custom_call.1} parent=1 // pred_fallthru
      _
    // Predicated region
    $region22: #{tpu_custom_call.1} parent=1 // pred_check
      _
    $region23: #{tpu_custom_call.1} parent=1 // pred_check_branch
      %90 = sbr.rel (0) target = $region25
    $region24: #{tpu_custom_call.1} parent=1 // pred_region
      %92 = dma.done [#allocation4], 256
    $region25: #{tpu_custom_call.1} parent=1 // pred_fallthru
      _
    %93 = vsyncpa [#allocation3], 1
    %94 = vsyncpa [#allocation6], 1
    %95 = vsyncpa [#allocation4], 1

</llo_original>
